<compile_context>
chip_gen: v5e
topology: v5e:2x2
jax: 0.10.0
libtpu: 0.0.40
codegen_flags: <defaults>
</compile_context>

<pallas_src>
import functools

import jax
import jax.numpy as jnp
from jax.experimental import pallas as pl
from jax.experimental.pallas import tpu as pltpu

LANE = 128      # TPU lane width (last dim of a vreg)
SUBLANE = 8     # TPU sublane width (second-to-last dim of a vreg, f32)


def _round_up(x, m):
    return ((x + m - 1) // m) * m


def policy_mlp_kernel(xt_ref, w1t_ref, b1_ref, w2t_ref, b2_ref, w3t_ref, b3_ref, o_ref):
    # All activations are (features, tb): batch on lanes, features on sublanes.
    # bf16 MXU matmuls with f32 accumulation; bias add + sigmoid in f32 (EUP).
    xt = xt_ref[...].astype(jnp.bfloat16)                              # (in_dim, tb)
    h1 = jax.nn.sigmoid(
        jnp.dot(w1t_ref[...], xt, preferred_element_type=jnp.float32)
        + b1_ref[...])                                                 # (hp, tb) f32
    h2 = jax.nn.sigmoid(
        jnp.dot(w2t_ref[...], h1.astype(jnp.bfloat16),
                preferred_element_type=jnp.float32) + b2_ref[...])     # (hp, tb) f32
    y = (jnp.dot(w3t_ref[...], h2.astype(jnp.bfloat16),
                 preferred_element_type=jnp.float32) + b3_ref[...])    # (op, tb) f32
    o_ref[...] = y.astype(o_ref.dtype)


def prepare_policy_params(w1, b1, w2, b2, w3, b3):
    """Pad / transpose / bf16-cast the Policy parameters ONCE; reuse across calls.

    Inputs use y = x @ W + b layout (W is (in_features, out_features), i.e. the
    transpose of PyTorch's nn.Linear weight); biases may be (F,) or (1, F).
    """
    w1 = jnp.asarray(w1, jnp.float32)
    w2 = jnp.asarray(w2, jnp.float32)
    w3 = jnp.asarray(w3, jnp.float32)
    b1 = jnp.asarray(b1, jnp.float32).reshape(-1)
    b2 = jnp.asarray(b2, jnp.float32).reshape(-1)
    b3 = jnp.asarray(b3, jnp.float32).reshape(-1)

    in_dim, hidden = w1.shape
    out_dim = w3.shape[1]
    hp = _round_up(hidden, LANE)       # hidden padded to 128 lanes-worth of units
    op = _round_up(out_dim, SUBLANE)   # output padded to 8 sublane rows (not 128)

    # Feature-major weights: h^T = W^T @ x^T.  Zero-initialized so padded hidden
    # units' downstream columns are exactly zero (neutralizes sigmoid(0)=0.5).
    w1t = jnp.zeros((hp, in_dim), jnp.bfloat16).at[:hidden, :].set(w1.T.astype(jnp.bfloat16))
    b1p = jnp.zeros((hp, 1), jnp.float32).at[:hidden, 0].set(b1)
    w2t = jnp.zeros((hp, hp), jnp.bfloat16).at[:hidden, :hidden].set(w2.T.astype(jnp.bfloat16))
    b2p = jnp.zeros((hp, 1), jnp.float32).at[:hidden, 0].set(b2)
    w3t = jnp.zeros((op, hp), jnp.bfloat16).at[:out_dim, :hidden].set(w3.T.astype(jnp.bfloat16))
    b3p = jnp.zeros((op, 1), jnp.float32).at[:out_dim, 0].set(b3)

    return {"w1t": w1t, "b1": b1p, "w2t": w2t, "b2": b2p, "w3t": w3t, "b3": b3p,
            "out_dim": int(out_dim)}


@functools.partial(jax.jit, static_argnames=("out_dim", "block_batch"))
def _policy_forward_prepared(x, w1t, b1, w2t, b2, w3t, b3, *, out_dim, block_batch):
    batch, in_dim = x.shape
    hp = w1t.shape[0]
    op = w3t.shape[0]

    # Batch tile: multiple of 128 lanes; guarantee >=2 grid steps when the batch
    # allows it so both v7x TensorCores get work (harmless extra step on v5e/v6e).
    bp = _round_up(batch, LANE)
    tb = min(_round_up(block_batch, LANE), bp)
    if bp >= 2 * LANE:
        tb = min(tb, _round_up(-(-bp // 2), LANE))
    padded_batch = _round_up(batch, tb)
    grid = (padded_batch // tb,)

    # Feature-major input: (in_dim, batch); zero-pad batch (lanes) to the tile grid.
    xt = x.astype(jnp.float32).T
    if padded_batch != batch:
        xt = jnp.pad(xt, ((0, 0), (0, padded_batch - batch)))

    cost = pl.CostEstimate(
        flops=2 * padded_batch * (in_dim * hp + hp * hp + hp * op),
        transcendentals=2 * padded_batch * hp,
        bytes_accessed=(xt.size * 4
                        + (w1t.size + w2t.size + w3t.size) * 2
                        + (b1.size + b2.size + b3.size) * 4
                        + op * padded_batch * 4),
    )

    out = pl.pallas_call(
        policy_mlp_kernel,
        out_shape=jax.ShapeDtypeStruct((op, padded_batch), jnp.float32),
        grid=grid,
        in_specs=[
            # x^T: tiled over the batch (lane) axis.
            pl.BlockSpec((in_dim, tb), lambda i: (0, i)),
            # Weights & biases: single full block, VMEM-resident across all steps.
            pl.BlockSpec((hp, in_dim), lambda i: (0, 0)),
            pl.BlockSpec((hp, 1), lambda i: (0, 0)),
            pl.BlockSpec((hp, hp), lambda i: (0, 0)),
            pl.BlockSpec((hp, 1), lambda i: (0, 0)),
            pl.BlockSpec((op, hp), lambda i: (0, 0)),
            pl.BlockSpec((op, 1), lambda i: (0, 0)),
        ],
        # Lane-dense (8, tb) output store: full-lane vst, minimal HBM bytes.
        out_specs=pl.BlockSpec((op, tb), lambda i: (0, i)),
        compiler_params=pltpu.CompilerParams(
            dimension_semantics=("parallel",)),   # megacore sharding on v7x
        cost_estimate=cost,
    )(xt, w1t, b1, w2t, b2, w3t, b3)

    return out[:out_dim, :batch].T


def policy_forward(x, params, *, block_batch=2048):
    """Forward pass of Policy: sigmoid(fc1) -> sigmoid(fc2) -> fc3."""
    return _policy_forward_prepared(
        x, params["w1t"], params["b1"], params["w2t"], params["b2"],
        params["w3t"], params["b3"],
        out_dim=params["out_dim"], block_batch=block_batch)


def init_linear(key, in_features, out_features):
    # Deterministic synthetic init mimicking nn.Linear's U(-1/sqrt(fan_in), 1/sqrt(fan_in)).
    kw, kb = jax.random.split(key)
    bound = 1.0 / jnp.sqrt(jnp.float32(in_features))
    w = jax.random.uniform(kw, (in_features, out_features), jnp.float32, -bound, bound)
    b = jax.random.uniform(kb, (1, out_features), jnp.float32, -bound, bound)
    return w, b


if __name__ == "__main__":
    # TODO(synk): car_dynamics env not available; use representative state/action dims.
    input_size = 4      # car.get_state_dim()
    hidden_size = 100   # from the reference script
    output_size = 2     # car.get_action_dim()
    batch = 32

    key = jax.random.PRNGKey(0)
    kx, k1, k2, k3, kx2 = jax.random.split(key, 5)

    x = jax.random.normal(kx, (batch, input_size), jnp.float32)
    w1, b1 = init_linear(k1, input_size, hidden_size)
    w2, b2 = init_linear(k2, hidden_size, hidden_size)
    w3, b3 = init_linear(k3, hidden_size, output_size)

    # Pad / transpose / cast the parameters once; reuse across forward calls.
    params = prepare_policy_params(w1, b1, w2, b2, w3, b3)

    out = jax.block_until_ready(policy_forward(x, params))

    # Pure-JAX f32 reference (same math as the PyTorch forward).  Tolerance is
    # relaxed because the kernel uses bf16 MXU operands (f32 accumulation).
    def ref_fwd(xv):
        h1 = jax.nn.sigmoid(xv @ w1 + b1)
        h2 = jax.nn.sigmoid(h1 @ w2 + b2)
        return h2 @ w3 + b3

    ref = ref_fwd(x)
    assert out.shape == (batch, output_size)
    assert jnp.allclose(out, ref, atol=5e-2, rtol=5e-2), float(jnp.max(jnp.abs(out - ref)))

    # Exercise the multi-step batch grid + batch-padding path.
    batch2 = 272
    x2 = jax.random.normal(kx2, (batch2, input_size), jnp.float32)
    out2 = jax.block_until_ready(policy_forward(x2, params))
    ref2 = ref_fwd(x2)
    assert out2.shape == (batch2, output_size)
    assert jnp.allclose(out2, ref2, atol=5e-2, rtol=5e-2)

    print("KERNEL_OK")
</pallas_src>

<mosaic_0001>
module attributes {stable_mosaic.version = 11 : i64} {
  func.func @policy_mlp_kernel(%arg0: i32, %arg1: memref<4x128xf32, #tpu.memory_space<vmem>>, %arg2: memref<128x4xbf16, #tpu.memory_space<vmem>>, %arg3: memref<128x1xf32, #tpu.memory_space<vmem>>, %arg4: memref<128x128xbf16, #tpu.memory_space<vmem>>, %arg5: memref<128x1xf32, #tpu.memory_space<vmem>>, %arg6: memref<8x128xbf16, #tpu.memory_space<vmem>>, %arg7: memref<8x1xf32, #tpu.memory_space<vmem>>, %arg8: memref<8x128xf32, #tpu.memory_space<vmem>>) attributes {dimension_semantics = [#tpu.dimension_semantics<parallel>], iteration_bounds = array<i64: 1>, scalar_prefetch = 0 : i64, scratch_operands = 0 : i64, tpu.core_type = #tpu.core_type<tc>, window_params = [{transform_indices = @transform_0, window_bounds = array<i64: 4, 128>}, {pipeline_mode = #tpu.pipeline_mode<synchronous>, transform_indices = @transform_1, window_bounds = array<i64: 128, 4>}, {pipeline_mode = #tpu.pipeline_mode<synchronous>, transform_indices = @transform_2, window_bounds = array<i64: 128, 1>}, {pipeline_mode = #tpu.pipeline_mode<synchronous>, transform_indices = @transform_3, window_bounds = array<i64: 128, 128>}, {pipeline_mode = #tpu.pipeline_mode<synchronous>, transform_indices = @transform_4, window_bounds = array<i64: 128, 1>}, {pipeline_mode = #tpu.pipeline_mode<synchronous>, transform_indices = @transform_5, window_bounds = array<i64: 8, 128>}, {pipeline_mode = #tpu.pipeline_mode<synchronous>, transform_indices = @transform_6, window_bounds = array<i64: 8, 1>}, {transform_indices = @transform_7, window_bounds = array<i64: 8, 128>}]} {
    %c0 = arith.constant 0 : index
    %c0_0 = arith.constant 0 : index
    %0 = vector.load %arg1[%c0, %c0_0] : memref<4x128xf32, #tpu.memory_space<vmem>>, vector<4x128xf32>
    %1 = arith.truncf %0 : vector<4x128xf32> to vector<4x128xbf16>
    %c0_1 = arith.constant 0 : index
    %c0_2 = arith.constant 0 : index
    %2 = vector.load %arg2[%c0_1, %c0_2] : memref<128x4xbf16, #tpu.memory_space<vmem>>, vector<128x4xbf16>
    %cst = arith.constant dense<0.000000e+00> : vector<128x128xf32>
    %3 = tpu.matmul %2, %1, %cst {dimension_numbers = #tpu.dot_dimension_numbers<[1], [0], [0], [1], [0, 0, 1, 1], [], []>} : vector<128x4xbf16>, vector<4x128xbf16>, vector<128x128xf32> -> vector<128x128xf32>
    %c0_3 = arith.constant 0 : index
    %c0_4 = arith.constant 0 : index
    %4 = vector.load %arg3[%c0_3, %c0_4] : memref<128x1xf32, #tpu.memory_space<vmem>>, vector<128x1xf32>
    %5 = vector.broadcast %4 : vector<128x1xf32> to vector<128x128xf32>
    %6 = arith.addf %3, %5 : vector<128x128xf32>
    %7 = arith.negf %6 : vector<128x128xf32>
    %8 = math.exp %7 : vector<128x128xf32>
    %cst_5 = arith.constant 1.000000e+00 : f32
    %9 = vector.broadcast %cst_5 : f32 to vector<128x128xf32>
    %10 = arith.addf %9, %8 : vector<128x128xf32>
    %11 = arith.divf %9, %10 : vector<128x128xf32>
    %c0_6 = arith.constant 0 : index
    %c0_7 = arith.constant 0 : index
    %12 = vector.load %arg4[%c0_6, %c0_7] : memref<128x128xbf16, #tpu.memory_space<vmem>>, vector<128x128xbf16>
    %13 = arith.truncf %11 : vector<128x128xf32> to vector<128x128xbf16>
    %cst_8 = arith.constant dense<0.000000e+00> : vector<128x128xf32>
    %14 = tpu.matmul %12, %13, %cst_8 {dimension_numbers = #tpu.dot_dimension_numbers<[1], [0], [0], [1], [0, 0, 1, 1], [], []>} : vector<128x128xbf16>, vector<128x128xbf16>, vector<128x128xf32> -> vector<128x128xf32>
    %c0_9 = arith.constant 0 : index
    %c0_10 = arith.constant 0 : index
    %15 = vector.load %arg5[%c0_9, %c0_10] : memref<128x1xf32, #tpu.memory_space<vmem>>, vector<128x1xf32>
    %16 = vector.broadcast %15 : vector<128x1xf32> to vector<128x128xf32>
    %17 = arith.addf %14, %16 : vector<128x128xf32>
    %18 = arith.negf %17 : vector<128x128xf32>
    %19 = math.exp %18 : vector<128x128xf32>
    %cst_11 = arith.constant 1.000000e+00 : f32
    %20 = vector.broadcast %cst_11 : f32 to vector<128x128xf32>
    %21 = arith.addf %20, %19 : vector<128x128xf32>
    %22 = arith.divf %20, %21 : vector<128x128xf32>
    %c0_12 = arith.constant 0 : index
    %c0_13 = arith.constant 0 : index
    %23 = vector.load %arg6[%c0_12, %c0_13] : memref<8x128xbf16, #tpu.memory_space<vmem>>, vector<8x128xbf16>
    %24 = arith.truncf %22 : vector<128x128xf32> to vector<128x128xbf16>
    %cst_14 = arith.constant dense<0.000000e+00> : vector<8x128xf32>
    %25 = tpu.matmul %23, %24, %cst_14 {dimension_numbers = #tpu.dot_dimension_numbers<[1], [0], [0], [1], [0, 0, 1, 1], [], []>} : vector<8x128xbf16>, vector<128x128xbf16>, vector<8x128xf32> -> vector<8x128xf32>
    %c0_15 = arith.constant 0 : index
    %c0_16 = arith.constant 0 : index
    %26 = vector.load %arg7[%c0_15, %c0_16] : memref<8x1xf32, #tpu.memory_space<vmem>>, vector<8x1xf32>
    %27 = vector.broadcast %26 : vector<8x1xf32> to vector<8x128xf32>
    %28 = arith.addf %25, %27 : vector<8x128xf32>
    %c0_17 = arith.constant 0 : index
    %c0_18 = arith.constant 0 : index
    %29 = vector.load %arg8[%c0_17, %c0_18] : memref<8x128xf32, #tpu.memory_space<vmem>>, vector<8x128xf32>
    tpu.vector_store %arg8[%c0_17, %c0_18], %28 {strides = array<i32>} : memref<8x128xf32, #tpu.memory_space<vmem>>, vector<8x128xf32>,
    return
  }
  func.func @transform_0(%arg0: i32) -> (i32, i32) {
    %c0_i32 = arith.constant 0 : i32
    %c0_i32_0 = arith.constant 0 : i32
    return %c0_i32, %arg0 : i32, i32
  }
  func.func @transform_1(%arg0: i32) -> (i32, i32) {
    %c0_i32 = arith.constant 0 : i32
    %c0_i32_0 = arith.constant 0 : i32
    %c0_i32_1 = arith.constant 0 : i32
    return %c0_i32, %c0_i32_0 : i32, i32
  }
  func.func @transform_2(%arg0: i32) -> (i32, i32) {
    %c0_i32 = arith.constant 0 : i32
    %c0_i32_0 = arith.constant 0 : i32
    %c0_i32_1 = arith.constant 0 : i32
    return %c0_i32, %c0_i32_0 : i32, i32
  }
  func.func @transform_3(%arg0: i32) -> (i32, i32) {
    %c0_i32 = arith.constant 0 : i32
    %c0_i32_0 = arith.constant 0 : i32
    %c0_i32_1 = arith.constant 0 : i32
    return %c0_i32, %c0_i32_0 : i32, i32
  }
  func.func @transform_4(%arg0: i32) -> (i32, i32) {
    %c0_i32 = arith.constant 0 : i32
    %c0_i32_0 = arith.constant 0 : i32
    %c0_i32_1 = arith.constant 0 : i32
    return %c0_i32, %c0_i32_0 : i32, i32
  }
  func.func @transform_5(%arg0: i32) -> (i32, i32) {
    %c0_i32 = arith.constant 0 : i32
    %c0_i32_0 = arith.constant 0 : i32
    %c0_i32_1 = arith.constant 0 : i32
    return %c0_i32, %c0_i32_0 : i32, i32
  }
  func.func @transform_6(%arg0: i32) -> (i32, i32) {
    %c0_i32 = arith.constant 0 : i32
    %c0_i32_0 = arith.constant 0 : i32
    %c0_i32_1 = arith.constant 0 : i32
    return %c0_i32, %c0_i32_0 : i32, i32
  }
  func.func @transform_7(%arg0: i32) -> (i32, i32) {
    %c0_i32 = arith.constant 0 : i32
    %c0_i32_0 = arith.constant 0 : i32
    return %c0_i32, %arg0 : i32, i32
  }
}

</mosaic_0001>

<llo_original>
// kernel: _policy_forward_prepared.1
$region0: #{_policy_forward_prepared.1}
  #allocation0 [shape = 'u32[]', space=smem, size = 0x4, offset = 0x4, fixed_abs, tag = 'smem constant byte address 0x4 - core index']
  #allocation1 [shape = 'u32[72,128]{1,0:T(1,128)}', space=vmem, size = 0x9000, scoped, tag = 'internal scratch']
  %s0 = inlined_call_operand.vmem [shape: f32[4,128], index: 0, kind: input, shape index: {}]
  %s1 = inlined_call_operand.vmem [shape: bf16[128,4], index: 1, kind: input, shape index: {}]
  %s2 = inlined_call_operand.vmem [shape: f32[128,1], index: 2, kind: input, shape index: {}]
  %s3 = inlined_call_operand.vmem [shape: bf16[128,128], index: 3, kind: input, shape index: {}]
  %s4 = inlined_call_operand.vmem [shape: f32[128,1], index: 4, kind: input, shape index: {}]
  %s5 = inlined_call_operand.vmem [shape: bf16[8,128], index: 5, kind: input, shape index: {}]
  %s6 = inlined_call_operand.vmem [shape: f32[8,1], index: 6, kind: input, shape index: {}]
  %s7 = inlined_call_operand.vmem [shape: f32[8,128], index: 7, kind: output, shape index: {}]
  %s8 = sld [smem:[#allocation0]]
  $region38: #{_policy_forward_prepared.1} parent=0
    _
  %s10 = ssub.s32 1, %s8
  %s11 = scalar_select 0, %s10, %s8
  // Predicated region
  $region2: #{_policy_forward_prepared.1} parent=0 // pred_check
    _
  $region3: #{_policy_forward_prepared.1} parent=0 // pred_check_branch
    %13 = sbr.rel (0) target = $region5
  $region4: #{_policy_forward_prepared.1} parent=0 // pred_region
    _
  $region5: #{_policy_forward_prepared.1} parent=0 // pred_fallthru
    _
  // Predicated region
  $region6: #{_policy_forward_prepared.1} parent=0 // pred_check
    _
  $region7: #{_policy_forward_prepared.1} parent=0 // pred_check_branch
    %15 = sbr.rel (0) target = $region9
  $region8: #{_policy_forward_prepared.1} parent=0 // pred_region
    _
  $region9: #{_policy_forward_prepared.1} parent=0 // pred_fallthru
    _
  // Predicated region
  $region10: #{_policy_forward_prepared.1} parent=0 // pred_check
    _
  $region11: #{_policy_forward_prepared.1} parent=0 // pred_check_branch
    %17 = sbr.rel (0) target = $region13
  $region12: #{_policy_forward_prepared.1} parent=0 // pred_region
    _
  $region13: #{_policy_forward_prepared.1} parent=0 // pred_fallthru
    _
  // Predicated region
  $region14: #{_policy_forward_prepared.1} parent=0 // pred_check
    _
  $region15: #{_policy_forward_prepared.1} parent=0 // pred_check_branch
    %19 = sbr.rel (0) target = $region17
  $region16: #{_policy_forward_prepared.1} parent=0 // pred_region
    _
  $region17: #{_policy_forward_prepared.1} parent=0 // pred_fallthru
    _
  // Predicated region
  $region18: #{_policy_forward_prepared.1} parent=0 // pred_check
    _
  $region19: #{_policy_forward_prepared.1} parent=0 // pred_check_branch
    %21 = sbr.rel (0) target = $region21
  $region20: #{_policy_forward_prepared.1} parent=0 // pred_region
    _
  $region21: #{_policy_forward_prepared.1} parent=0 // pred_fallthru
    _
  // Predicated region
  $region22: #{_policy_forward_prepared.1} parent=0 // pred_check
    _
  $region23: #{_policy_forward_prepared.1} parent=0 // pred_check_branch
    %23 = sbr.rel (0) target = $region25
  $region24: #{_policy_forward_prepared.1} parent=0 // pred_region
    _
  $region25: #{_policy_forward_prepared.1} parent=0 // pred_fallthru
    _
  // Predicated region
  $region26: #{_policy_forward_prepared.1} parent=0 // pred_check
    _
  $region27: #{_policy_forward_prepared.1} parent=0 // pred_check_branch
    %25 = sbr.rel (0) target = $region29
  $region28: #{_policy_forward_prepared.1} parent=0 // pred_region
    _
  $region29: #{_policy_forward_prepared.1} parent=0 // pred_fallthru
    _
  %v27 = vld [vmem:[%s0] sm:$0xf]
  %v28 = vpack.c.bf16 %v27, %v27
  %v29 = vld [vmem:[%s1] sm:$0xf]
  %v30 = vld [vmem:[%s1 + $0x4] sm:$0xf]
  %v31 = vld [vmem:[%s1 + $0x8] sm:$0xf]
  %v32 = vld [vmem:[%s1 + $0xc] sm:$0xf]
  %v33 = vld [vmem:[%s1 + $0x10] sm:$0xf]
  %v34 = vld [vmem:[%s1 + $0x14] sm:$0xf]
  %v35 = vld [vmem:[%s1 + $0x18] sm:$0xf]
  %v36 = vld [vmem:[%s1 + $0x1c] sm:$0xf]
  %v37 = vld [vmem:[%s1 + $0x20] sm:$0xf]
  %v38 = vld [vmem:[%s1 + $0x24] sm:$0xf]
  %v39 = vld [vmem:[%s1 + $0x28] sm:$0xf]
  %v40 = vld [vmem:[%s1 + $0x2c] sm:$0xf]
  %v41 = vld [vmem:[%s1 + $0x30] sm:$0xf]
  %v42 = vld [vmem:[%s1 + $0x34] sm:$0xf]
  %v43 = vld [vmem:[%s1 + $0x38] sm:$0xf]
  %v44 = vld [vmem:[%s1 + $0x3c] sm:$0xf]
  %v45 = vld [vmem:[%s2] sm:$0xff]
  %v46 = vld [vmem:[%s2 + $0x8] sm:$0xff]
  %v47 = vld [vmem:[%s2 + $0x10] sm:$0xff]
  %v48 = vld [vmem:[%s2 + $0x18] sm:$0xff]
  %v49 = vld [vmem:[%s2 + $0x20] sm:$0xff]
  %v50 = vld [vmem:[%s2 + $0x28] sm:$0xff]
  %v51 = vld [vmem:[%s2 + $0x30] sm:$0xff]
  %v52 = vld [vmem:[%s2 + $0x38] sm:$0xff]
  %v53 = vld [vmem:[%s2 + $0x40] sm:$0xff]
  %v54 = vld [vmem:[%s2 + $0x48] sm:$0xff]
  %v55 = vld [vmem:[%s2 + $0x50] sm:$0xff]
  %v56 = vld [vmem:[%s2 + $0x58] sm:$0xff]
  %v57 = vld [vmem:[%s2 + $0x60] sm:$0xff]
  %v58 = vld [vmem:[%s2 + $0x68] sm:$0xff]
  %v59 = vld [vmem:[%s2 + $0x70] sm:$0xff]
  %v60 = vld [vmem:[%s2 + $0x78] sm:$0xff]
  %62 = vset.pattern.permute.xlu0 0
  %63 = vperm.xlu0 %62, %v45
  %v64 = vpop.permute.xlu0 %63
  %67 = vset.pattern.permute.xlu0 0
  %68 = vperm.xlu0 %67, %v46
  %v69 = vpop.permute.xlu0 %68
  %72 = vset.pattern.permute.xlu0 0
  %73 = vperm.xlu0 %72, %v47
  %v74 = vpop.permute.xlu0 %73
  %77 = vset.pattern.permute.xlu0 0
  %78 = vperm.xlu0 %77, %v48
  %v79 = vpop.permute.xlu0 %78
  %82 = vset.pattern.permute.xlu0 0
  %83 = vperm.xlu0 %82, %v49
  %v84 = vpop.permute.xlu0 %83
  %87 = vset.pattern.permute.xlu0 0
  %88 = vperm.xlu0 %87, %v50
  %v89 = vpop.permute.xlu0 %88
  %92 = vset.pattern.permute.xlu0 0
  %93 = vperm.xlu0 %92, %v51
  %v94 = vpop.permute.xlu0 %93
  %97 = vset.pattern.permute.xlu0 0
  %98 = vperm.xlu0 %97, %v52
  %v99 = vpop.permute.xlu0 %98
  %102 = vset.pattern.permute.xlu0 0
  %103 = vperm.xlu0 %102, %v53
  %v104 = vpop.permute.xlu0 %103
  %107 = vset.pattern.permute.xlu0 0
  %108 = vperm.xlu0 %107, %v54
  %v109 = vpop.permute.xlu0 %108
  %112 = vset.pattern.permute.xlu0 0
  %113 = vperm.xlu0 %112, %v55
  %v114 = vpop.permute.xlu0 %113
  %117 = vset.pattern.permute.xlu0 0
  %118 = vperm.xlu0 %117, %v56
  %v119 = vpop.permute.xlu0 %118
  %122 = vset.pattern.permute.xlu0 0
  %123 = vperm.xlu0 %122, %v57
  %v124 = vpop.permute.xlu0 %123
  %127 = vset.pattern.permute.xlu0 0
  %128 = vperm.xlu0 %127, %v58
  %v129 = vpop.permute.xlu0 %128
  %132 = vset.pattern.permute.xlu0 0
  %133 = vperm.xlu0 %132, %v59
  %v134 = vpop.permute.xlu0 %133
  %137 = vset.pattern.permute.xlu0 0
  %138 = vperm.xlu0 %137, %v60
  %v139 = vpop.permute.xlu0 %138
  %v157 = vunpack.c.l.b16 %v29
  %v158 = vunpack.c.l.b16 %v30
  %v159 = vunpack.c.l.b16 %v31
  %v160 = vunpack.c.l.b16 %v32
  %v161 = vunpack.c.l.b16 %v33
  %v162 = vunpack.c.l.b16 %v34
  %v163 = vunpack.c.l.b16 %v35
  %v164 = vunpack.c.l.b16 %v36
  %v165 = vunpack.c.l.b16 %v37
  %v166 = vunpack.c.l.b16 %v38
  %v167 = vunpack.c.l.b16 %v39
  %v168 = vunpack.c.l.b16 %v40
  %v169 = vunpack.c.l.b16 %v41
  %v170 = vunpack.c.l.b16 %v42
  %v171 = vunpack.c.l.b16 %v43
  %v172 = vunpack.c.l.b16 %v44
  %v173 = vpack.c.b16 %v158, %v157
  %v174 = vpack.c.b16 %v160, %v159
  %v175 = vpack.c.b16 %v162, %v161
  %v176 = vpack.c.b16 %v164, %v163
  %v177 = vpack.c.b16 %v166, %v165
  %v178 = vpack.c.b16 %v168, %v167
  %v179 = vpack.c.b16 %v170, %v169
  %v180 = vpack.c.b16 %v172, %v171
  %vm181 = vcmask 31744
  %v183 = vsel %vm181, %v173, 0
  %v186 = vsel %vm181, %v174, 0
  %v189 = vsel %vm181, %v175, 0
  %v192 = vsel %vm181, %v176, 0
  %v195 = vsel %vm181, %v177, 0
  %v198 = vsel %vm181, %v178, 0
  %v201 = vsel %vm181, %v179, 0
  %v204 = vsel %vm181, %v180, 0
  %vm206 = vcmask 1041408
  %v208 = vsel %vm206, %v28, 0
  %210 = vmatpush.bf16.msra.mxu0 0
  %211 = vmatpush.bf16.msra.mxu0 0
  %212 = vmatpush.bf16.msra.mxu0 0
  %213 = vmatpush.bf16.msra.mxu0 0
  %214 = vmatpush.bf16.msra.mxu0 0
  %215 = vmatpush.bf16.msra.mxu0 0
  %216 = vmatpush.bf16.msra.mxu0 0
  %217 = vmatpush.bf16.msra.mxu0 %v208
  %218 = vmatmul.bf16.gmra.mxu0 %v183
  %v219 = vpop.f32.mrf.mxu0
  %v220 = vadd.f32 %v64, %v219
  %v221 = vpop.f32.mrf.mxu0
  %v222 = vadd.f32 %v69, %v221
  %223 = vmatmul.bf16.gmra.mxu0 %v186
  %v224 = vpop.f32.mrf.mxu0
  %v225 = vadd.f32 %v74, %v224
  %v226 = vpop.f32.mrf.mxu0
  %v227 = vadd.f32 %v79, %v226
  %228 = vmatmul.bf16.gmra.mxu0 %v189
  %v229 = vpop.f32.mrf.mxu0
  %v230 = vadd.f32 %v84, %v229
  %v231 = vpop.f32.mrf.mxu0
  %v232 = vadd.f32 %v89, %v231
  %233 = vmatmul.bf16.gmra.mxu0 %v192
  %v234 = vpop.f32.mrf.mxu0
  %v235 = vadd.f32 %v94, %v234
  %v236 = vpop.f32.mrf.mxu0
  %v237 = vadd.f32 %v99, %v236
  %238 = vmatmul.bf16.gmra.mxu0 %v195
  %v239 = vpop.f32.mrf.mxu0
  %v240 = vadd.f32 %v104, %v239
  %v241 = vpop.f32.mrf.mxu0
  %v242 = vadd.f32 %v109, %v241
  %243 = vmatmul.bf16.gmra.mxu0 %v198
  %v244 = vpop.f32.mrf.mxu0
  %v245 = vadd.f32 %v114, %v244
  %v246 = vpop.f32.mrf.mxu0
  %v247 = vadd.f32 %v119, %v246
  %248 = vmatmul.bf16.gmra.mxu0 %v201
  %v249 = vpop.f32.mrf.mxu0
  %v250 = vadd.f32 %v124, %v249
  %v251 = vpop.f32.mrf.mxu0
  %v252 = vadd.f32 %v129, %v251
  %253 = vmatmul.bf16.gmra.mxu0 %v204
  %v254 = vpop.f32.mrf.mxu0
  %v255 = vadd.f32 %v134, %v254
  %v256 = vpop.f32.mrf.mxu0
  %v257 = vadd.f32 %v139, %v256
  %258 = vdwg.mxu0
  %v259 = vxor.u32 %v220, 2147483648
  %v260 = vxor.u32 %v222, 2147483648
  %v261 = vxor.u32 %v225, 2147483648
  %v262 = vxor.u32 %v227, 2147483648
  %v263 = vxor.u32 %v230, 2147483648
  %v264 = vxor.u32 %v232, 2147483648
  %v265 = vxor.u32 %v235, 2147483648
  %v266 = vxor.u32 %v237, 2147483648
  %v267 = vxor.u32 %v240, 2147483648
  %v268 = vxor.u32 %v242, 2147483648
  %v269 = vxor.u32 %v245, 2147483648
  %v270 = vxor.u32 %v247, 2147483648
  %v271 = vxor.u32 %v250, 2147483648
  %v272 = vxor.u32 %v252, 2147483648
  %v273 = vxor.u32 %v255, 2147483648
  %v274 = vxor.u32 %v257, 2147483648
  %v275 = vmul.f32 %v259, 1.442695
  %v276 = vpow.pop %v275
  %v277 = vmul.f32 %v260, 1.442695
  %v278 = vpow.pop %v277
  %v279 = vmul.f32 %v261, 1.442695
  %v280 = vpow.pop %v279
  %v281 = vmul.f32 %v262, 1.442695
  %v282 = vpow.pop %v281
  %v283 = vmul.f32 %v263, 1.442695
  %v284 = vpow.pop %v283
  %v285 = vmul.f32 %v264, 1.442695
  %v286 = vpow.pop %v285
  %v287 = vmul.f32 %v265, 1.442695
  %v288 = vpow.pop %v287
  %v289 = vmul.f32 %v266, 1.442695
  %v290 = vpow.pop %v289
  %v291 = vmul.f32 %v267, 1.442695
  %v292 = vpow.pop %v291
  %v293 = vmul.f32 %v268, 1.442695
  %v294 = vpow.pop %v293
  %v295 = vmul.f32 %v269, 1.442695
  %v296 = vpow.pop %v295
  %v297 = vmul.f32 %v270, 1.442695
  %v298 = vpow.pop %v297
  %v299 = vmul.f32 %v271, 1.442695
  %v300 = vpow.pop %v299
  %v301 = vmul.f32 %v272, 1.442695
  %v302 = vpow.pop %v301
  %v303 = vmul.f32 %v273, 1.442695
  %v304 = vpow.pop %v303
  %v305 = vmul.f32 %v274, 1.442695
  %v306 = vpow.pop %v305
  %v307 = vadd.f32 %v276, 1.0
  %v308 = vadd.f32 %v278, 1.0
  %v309 = vadd.f32 %v280, 1.0
  %v310 = vadd.f32 %v282, 1.0
  %v311 = vadd.f32 %v284, 1.0
  %v312 = vadd.f32 %v286, 1.0
  %v313 = vadd.f32 %v288, 1.0
  %v314 = vadd.f32 %v290, 1.0
  %v315 = vadd.f32 %v292, 1.0
  %v316 = vadd.f32 %v294, 1.0
  %v317 = vadd.f32 %v296, 1.0
  %v318 = vadd.f32 %v298, 1.0
  %v319 = vadd.f32 %v300, 1.0
  %v320 = vadd.f32 %v302, 1.0
  %v321 = vadd.f32 %v304, 1.0
  %v322 = vadd.f32 %v306, 1.0
  %v323 = vrcp.pop %v307
  %v324 = vmul.f32 %v307, %v323
  %v325 = vsub.f32 1.0, %v324
  %v326 = vmul.f32 %v323, %v325
  %v327 = vadd.f32 %v323, %v326
  %vm328 = vweird.f32 %v307
  %vm329 = vweird.f32 %v323
  %vm330 = vmor %vm328, %vm329
  %v331 = vsel %vm330, %v323, %v327
  %v332 = vand.u32 2147483647, %v307
  %vm333 = vcmp.eq.f32.partialorder %v332, 8.507059e+37
  %v334 = vand.u32 %v307, 2147483648
  %v335 = vor.u32 1.1754944e-38, %v334
  %v336 = vsel %vm333, %v335, %v331
  %v337 = vmul.f32 1.0, %v336
  %v338 = vrcp.pop %v308
  %v339 = vmul.f32 %v308, %v338
  %v340 = vsub.f32 1.0, %v339
  %v341 = vmul.f32 %v338, %v340
  %v342 = vadd.f32 %v338, %v341
  %vm343 = vweird.f32 %v308
  %vm344 = vweird.f32 %v338
  %vm345 = vmor %vm343, %vm344
  %v346 = vsel %vm345, %v338, %v342
  %v347 = vand.u32 2147483647, %v308
  %vm348 = vcmp.eq.f32.partialorder %v347, 8.507059e+37
  %v349 = vand.u32 %v308, 2147483648
  %v350 = vor.u32 1.1754944e-38, %v349
  %v351 = vsel %vm348, %v350, %v346
  %v352 = vmul.f32 1.0, %v351
  %v353 = vrcp.pop %v309
  %v354 = vmul.f32 %v309, %v353
  %v355 = vsub.f32 1.0, %v354
  %v356 = vmul.f32 %v353, %v355
  %v357 = vadd.f32 %v353, %v356
  %vm358 = vweird.f32 %v309
  %vm359 = vweird.f32 %v353
  %vm360 = vmor %vm358, %vm359
  %v361 = vsel %vm360, %v353, %v357
  %v362 = vand.u32 2147483647, %v309
  %vm363 = vcmp.eq.f32.partialorder %v362, 8.507059e+37
  %v364 = vand.u32 %v309, 2147483648
  %v365 = vor.u32 1.1754944e-38, %v364
  %v366 = vsel %vm363, %v365, %v361
  %v367 = vmul.f32 1.0, %v366
  %v368 = vrcp.pop %v310
  %v369 = vmul.f32 %v310, %v368
  %v370 = vsub.f32 1.0, %v369
  %v371 = vmul.f32 %v368, %v370
  %v372 = vadd.f32 %v368, %v371
  %vm373 = vweird.f32 %v310
  %vm374 = vweird.f32 %v368
  %vm375 = vmor %vm373, %vm374
  %v376 = vsel %vm375, %v368, %v372
  %v377 = vand.u32 2147483647, %v310
  %vm378 = vcmp.eq.f32.partialorder %v377, 8.507059e+37
  %v379 = vand.u32 %v310, 2147483648
  %v380 = vor.u32 1.1754944e-38, %v379
  %v381 = vsel %vm378, %v380, %v376
  %v382 = vmul.f32 1.0, %v381
  %v383 = vrcp.pop %v311
  %v384 = vmul.f32 %v311, %v383
  %v385 = vsub.f32 1.0, %v384
  %v386 = vmul.f32 %v383, %v385
  %v387 = vadd.f32 %v383, %v386
  %vm388 = vweird.f32 %v311
  %vm389 = vweird.f32 %v383
  %vm390 = vmor %vm388, %vm389
  %v391 = vsel %vm390, %v383, %v387
  %v392 = vand.u32 2147483647, %v311
  %vm393 = vcmp.eq.f32.partialorder %v392, 8.507059e+37
  %v394 = vand.u32 %v311, 2147483648
  %v395 = vor.u32 1.1754944e-38, %v394
  %v396 = vsel %vm393, %v395, %v391
  %v397 = vmul.f32 1.0, %v396
  %v398 = vrcp.pop %v312
  %v399 = vmul.f32 %v312, %v398
  %v400 = vsub.f32 1.0, %v399
  %v401 = vmul.f32 %v398, %v400
  %v402 = vadd.f32 %v398, %v401
  %vm403 = vweird.f32 %v312
  %vm404 = vweird.f32 %v398
  %vm405 = vmor %vm403, %vm404
  %v406 = vsel %vm405, %v398, %v402
  %v407 = vand.u32 2147483647, %v312
  %vm408 = vcmp.eq.f32.partialorder %v407, 8.507059e+37
  %v409 = vand.u32 %v312, 2147483648
  %v410 = vor.u32 1.1754944e-38, %v409
  %v411 = vsel %vm408, %v410, %v406
  %v412 = vmul.f32 1.0, %v411
  %v413 = vrcp.pop %v313
  %v414 = vmul.f32 %v313, %v413
  %v415 = vsub.f32 1.0, %v414
  %v416 = vmul.f32 %v413, %v415
  %v417 = vadd.f32 %v413, %v416
  %vm418 = vweird.f32 %v313
  %vm419 = vweird.f32 %v413
  %vm420 = vmor %vm418, %vm419
  %v421 = vsel %vm420, %v413, %v417
  %v422 = vand.u32 2147483647, %v313
  %vm423 = vcmp.eq.f32.partialorder %v422, 8.507059e+37
  %v424 = vand.u32 %v313, 2147483648
  %v425 = vor.u32 1.1754944e-38, %v424
  %v426 = vsel %vm423, %v425, %v421
  %v427 = vmul.f32 1.0, %v426
  %v428 = vrcp.pop %v314
  %v429 = vmul.f32 %v314, %v428
  %v430 = vsub.f32 1.0, %v429
  %v431 = vmul.f32 %v428, %v430
  %v432 = vadd.f32 %v428, %v431
  %vm433 = vweird.f32 %v314
  %vm434 = vweird.f32 %v428
  %vm435 = vmor %vm433, %vm434
  %v436 = vsel %vm435, %v428, %v432
  %v437 = vand.u32 2147483647, %v314
  %vm438 = vcmp.eq.f32.partialorder %v437, 8.507059e+37
  %v439 = vand.u32 %v314, 2147483648
  %v440 = vor.u32 1.1754944e-38, %v439
  %v441 = vsel %vm438, %v440, %v436
  %v442 = vmul.f32 1.0, %v441
  %v443 = vrcp.pop %v315
  %v444 = vmul.f32 %v315, %v443
  %v445 = vsub.f32 1.0, %v444
  %v446 = vmul.f32 %v443, %v445
  %v447 = vadd.f32 %v443, %v446
  %vm448 = vweird.f32 %v315
  %vm449 = vweird.f32 %v443
  %vm450 = vmor %vm448, %vm449
  %v451 = vsel %vm450, %v443, %v447
  %v452 = vand.u32 2147483647, %v315
  %vm453 = vcmp.eq.f32.partialorder %v452, 8.507059e+37
  %v454 = vand.u32 %v315, 2147483648
  %v455 = vor.u32 1.1754944e-38, %v454
  %v456 = vsel %vm453, %v455, %v451
  %v457 = vmul.f32 1.0, %v456
  %v458 = vrcp.pop %v316
  %v459 = vmul.f32 %v316, %v458
  %v460 = vsub.f32 1.0, %v459
  %v461 = vmul.f32 %v458, %v460
  %v462 = vadd.f32 %v458, %v461
  %vm463 = vweird.f32 %v316
  %vm464 = vweird.f32 %v458
  %vm465 = vmor %vm463, %vm464
  %v466 = vsel %vm465, %v458, %v462
  %v467 = vand.u32 2147483647, %v316
  %vm468 = vcmp.eq.f32.partialorder %v467, 8.507059e+37
  %v469 = vand.u32 %v316, 2147483648
  %v470 = vor.u32 1.1754944e-38, %v469
  %v471 = vsel %vm468, %v470, %v466
  %v472 = vmul.f32 1.0, %v471
  %v473 = vrcp.pop %v317
  %v474 = vmul.f32 %v317, %v473
  %v475 = vsub.f32 1.0, %v474
  %v476 = vmul.f32 %v473, %v475
  %v477 = vadd.f32 %v473, %v476
  %vm478 = vweird.f32 %v317
  %vm479 = vweird.f32 %v473
  %vm480 = vmor %vm478, %vm479
  %v481 = vsel %vm480, %v473, %v477
  %v482 = vand.u32 2147483647, %v317
  %vm483 = vcmp.eq.f32.partialorder %v482, 8.507059e+37
  %v484 = vand.u32 %v317, 2147483648
  %v485 = vor.u32 1.1754944e-38, %v484
  %v486 = vsel %vm483, %v485, %v481
  %v487 = vmul.f32 1.0, %v486
  %v488 = vrcp.pop %v318
  %v489 = vmul.f32 %v318, %v488
  %v490 = vsub.f32 1.0, %v489
  %v491 = vmul.f32 %v488, %v490
  %v492 = vadd.f32 %v488, %v491
  %vm493 = vweird.f32 %v318
  %vm494 = vweird.f32 %v488
  %vm495 = vmor %vm493, %vm494
  %v496 = vsel %vm495, %v488, %v492
  %v497 = vand.u32 2147483647, %v318
  %vm498 = vcmp.eq.f32.partialorder %v497, 8.507059e+37
  %v499 = vand.u32 %v318, 2147483648
  %v500 = vor.u32 1.1754944e-38, %v499
  %v501 = vsel %vm498, %v500, %v496
  %v502 = vmul.f32 1.0, %v501
  %v503 = vrcp.pop %v319
  %v504 = vmul.f32 %v319, %v503
  %v505 = vsub.f32 1.0, %v504
  %v506 = vmul.f32 %v503, %v505
  %v507 = vadd.f32 %v503, %v506
  %vm508 = vweird.f32 %v319
  %vm509 = vweird.f32 %v503
  %vm510 = vmor %vm508, %vm509
  %v511 = vsel %vm510, %v503, %v507
  %v512 = vand.u32 2147483647, %v319
  %vm513 = vcmp.eq.f32.partialorder %v512, 8.507059e+37
  %v514 = vand.u32 %v319, 2147483648
  %v515 = vor.u32 1.1754944e-38, %v514
  %v516 = vsel %vm513, %v515, %v511
  %v517 = vmul.f32 1.0, %v516
  %v518 = vrcp.pop %v320
  %v519 = vmul.f32 %v320, %v518
  %v520 = vsub.f32 1.0, %v519
  %v521 = vmul.f32 %v518, %v520
  %v522 = vadd.f32 %v518, %v521
  %vm523 = vweird.f32 %v320
  %vm524 = vweird.f32 %v518
  %vm525 = vmor %vm523, %vm524
  %v526 = vsel %vm525, %v518, %v522
  %v527 = vand.u32 2147483647, %v320
  %vm528 = vcmp.eq.f32.partialorder %v527, 8.507059e+37
  %v529 = vand.u32 %v320, 2147483648
  %v530 = vor.u32 1.1754944e-38, %v529
  %v531 = vsel %vm528, %v530, %v526
  %v532 = vmul.f32 1.0, %v531
  %v533 = vrcp.pop %v321
  %v534 = vmul.f32 %v321, %v533
  %v535 = vsub.f32 1.0, %v534
  %v536 = vmul.f32 %v533, %v535
  %v537 = vadd.f32 %v533, %v536
  %vm538 = vweird.f32 %v321
  %vm539 = vweird.f32 %v533
  %vm540 = vmor %vm538, %vm539
  %v541 = vsel %vm540, %v533, %v537
  %v542 = vand.u32 2147483647, %v321
  %vm543 = vcmp.eq.f32.partialorder %v542, 8.507059e+37
  %v544 = vand.u32 %v321, 2147483648
  %v545 = vor.u32 1.1754944e-38, %v544
  %v546 = vsel %vm543, %v545, %v541
  %v547 = vmul.f32 1.0, %v546
  %v548 = vrcp.pop %v322
  %v549 = vmul.f32 %v322, %v548
  %v550 = vsub.f32 1.0, %v549
  %v551 = vmul.f32 %v548, %v550
  %v552 = vadd.f32 %v548, %v551
  %vm553 = vweird.f32 %v322
  %vm554 = vweird.f32 %v548
  %vm555 = vmor %vm553, %vm554
  %v556 = vsel %vm555, %v548, %v552
  %v557 = vand.u32 2147483647, %v322
  %vm558 = vcmp.eq.f32.partialorder %v557, 8.507059e+37
  %v559 = vand.u32 %v322, 2147483648
  %v560 = vor.u32 1.1754944e-38, %v559
  %v561 = vsel %vm558, %v560, %v556
  %v562 = vmul.f32 1.0, %v561
  %v563 = vld [vmem:[%s3] sm:$0xf]
  %v564 = vld [vmem:[%s3 + $0x4] sm:$0xf]
  %v565 = vld [vmem:[%s3 + $0x8] sm:$0xf]
  %v566 = vld [vmem:[%s3 + $0xc] sm:$0xf]
  %v567 = vld [vmem:[%s3 + $0x10] sm:$0xf]
  %v568 = vld [vmem:[%s3 + $0x14] sm:$0xf]
  %v569 = vld [vmem:[%s3 + $0x18] sm:$0xf]
  %v570 = vld [vmem:[%s3 + $0x1c] sm:$0xf]
  %v571 = vld [vmem:[%s3 + $0x20] sm:$0xf]
  %v572 = vld [vmem:[%s3 + $0x24] sm:$0xf]
  %v573 = vld [vmem:[%s3 + $0x28] sm:$0xf]
  %v574 = vld [vmem:[%s3 + $0x2c] sm:$0xf]
  %v575 = vld [vmem:[%s3 + $0x30] sm:$0xf]
  %v576 = vld [vmem:[%s3 + $0x34] sm:$0xf]
  %v577 = vld [vmem:[%s3 + $0x38] sm:$0xf]
  %v578 = vld [vmem:[%s3 + $0x3c] sm:$0xf]
  %v579 = vpack.c.bf16 %v352, %v337
  %v580 = vpack.c.bf16 %v382, %v367
  %v581 = vpack.c.bf16 %v412, %v397
  %v582 = vpack.c.bf16 %v442, %v427
  %v583 = vpack.c.bf16 %v472, %v457
  %v584 = vpack.c.bf16 %v502, %v487
  %v585 = vpack.c.bf16 %v532, %v517
  %v586 = vpack.c.bf16 %v562, %v547
  %v587 = vld [vmem:[%s4] sm:$0xff]
  %v588 = vld [vmem:[%s4 + $0x8] sm:$0xff]
  %v589 = vld [vmem:[%s4 + $0x10] sm:$0xff]
  %v590 = vld [vmem:[%s4 + $0x18] sm:$0xff]
  %v591 = vld [vmem:[%s4 + $0x20] sm:$0xff]
  %v592 = vld [vmem:[%s4 + $0x28] sm:$0xff]
  %v593 = vld [vmem:[%s4 + $0x30] sm:$0xff]
  %v594 = vld [vmem:[%s4 + $0x38] sm:$0xff]
  %v595 = vld [vmem:[%s4 + $0x40] sm:$0xff]
  %v596 = vld [vmem:[%s4 + $0x48] sm:$0xff]
  %v597 = vld [vmem:[%s4 + $0x50] sm:$0xff]
  %v598 = vld [vmem:[%s4 + $0x58] sm:$0xff]
  %v599 = vld [vmem:[%s4 + $0x60] sm:$0xff]
  %v600 = vld [vmem:[%s4 + $0x68] sm:$0xff]
  %v601 = vld [vmem:[%s4 + $0x70] sm:$0xff]
  %v602 = vld [vmem:[%s4 + $0x78] sm:$0xff]
  %604 = vset.pattern.permute.xlu0 0
  %605 = vperm.xlu0 %604, %v587
  %v606 = vpop.permute.xlu0 %605
  %609 = vset.pattern.permute.xlu0 0
  %610 = vperm.xlu0 %609, %v588
  %v611 = vpop.permute.xlu0 %610
  %614 = vset.pattern.permute.xlu0 0
  %615 = vperm.xlu0 %614, %v589
  %v616 = vpop.permute.xlu0 %615
  %619 = vset.pattern.permute.xlu0 0
  %620 = vperm.xlu0 %619, %v590
  %v621 = vpop.permute.xlu0 %620
  %624 = vset.pattern.permute.xlu0 0
  %625 = vperm.xlu0 %624, %v591
  %v626 = vpop.permute.xlu0 %625
  %629 = vset.pattern.permute.xlu0 0
  %630 = vperm.xlu0 %629, %v592
  %v631 = vpop.permute.xlu0 %630
  %634 = vset.pattern.permute.xlu0 0
  %635 = vperm.xlu0 %634, %v593
  %v636 = vpop.permute.xlu0 %635
  %639 = vset.pattern.permute.xlu0 0
  %640 = vperm.xlu0 %639, %v594
  %v641 = vpop.permute.xlu0 %640
  %644 = vset.pattern.permute.xlu0 0
  %645 = vperm.xlu0 %644, %v595
  %v646 = vpop.permute.xlu0 %645
  %649 = vset.pattern.permute.xlu0 0
  %650 = vperm.xlu0 %649, %v596
  %v651 = vpop.permute.xlu0 %650
  %654 = vset.pattern.permute.xlu0 0
  %655 = vperm.xlu0 %654, %v597
  %v656 = vpop.permute.xlu0 %655
  %659 = vset.pattern.permute.xlu0 0
  %660 = vperm.xlu0 %659, %v598
  %v661 = vpop.permute.xlu0 %660
  %664 = vset.pattern.permute.xlu0 0
  %665 = vperm.xlu0 %664, %v599
  %v666 = vpop.permute.xlu0 %665
  %669 = vset.pattern.permute.xlu0 0
  %670 = vperm.xlu0 %669, %v600
  %v671 = vpop.permute.xlu0 %670
  %674 = vset.pattern.permute.xlu0 0
  %675 = vperm.xlu0 %674, %v601
  %v676 = vpop.permute.xlu0 %675
  %679 = vset.pattern.permute.xlu0 0
  %680 = vperm.xlu0 %679, %v602
  %v681 = vpop.permute.xlu0 %680
  %v699 = vunpack.c.l.b16 %v563
  %v700 = vunpack.c.l.b16 %v564
  %v701 = vunpack.c.l.b16 %v565
  %v702 = vunpack.c.l.b16 %v566
  %v703 = vunpack.c.l.b16 %v567
  %v704 = vunpack.c.l.b16 %v568
  %v705 = vunpack.c.l.b16 %v569
  %v706 = vunpack.c.l.b16 %v570
  %v707 = vunpack.c.l.b16 %v571
  %v708 = vunpack.c.l.b16 %v572
  %v709 = vunpack.c.l.b16 %v573
  %v710 = vunpack.c.l.b16 %v574
  %v711 = vunpack.c.l.b16 %v575
  %v712 = vunpack.c.l.b16 %v576
  %v713 = vunpack.c.l.b16 %v577
  %v714 = vunpack.c.l.b16 %v578
  %v715 = vpack.c.b16 %v700, %v699
  %v716 = vpack.c.b16 %v702, %v701
  %v717 = vpack.c.b16 %v704, %v703
  %v718 = vpack.c.b16 %v706, %v705
  %v719 = vpack.c.b16 %v708, %v707
  %v720 = vpack.c.b16 %v710, %v709
  %v721 = vpack.c.b16 %v712, %v711
  %v722 = vpack.c.b16 %v714, %v713
  %731 = vmatpush.bf16.msra.mxu0 %v586
  %732 = vmatpush.bf16.msra.mxu0 %v585
  %733 = vmatpush.bf16.msra.mxu0 %v584
  %734 = vmatpush.bf16.msra.mxu0 %v583
  %735 = vmatpush.bf16.msra.mxu0 %v582
  %736 = vmatpush.bf16.msra.mxu0 %v581
  %737 = vmatpush.bf16.msra.mxu0 %v580
  %738 = vmatpush.bf16.msra.mxu0 %v579
  %739 = vmatmul.bf16.gmra.mxu0 %v715
  %v740 = vpop.f32.mrf.mxu0
  %v741 = vadd.f32 %v606, %v740
  %v742 = vpop.f32.mrf.mxu0
  %v743 = vadd.f32 %v611, %v742
  %744 = vmatmul.bf16.gmra.mxu0 %v716
  %v745 = vpop.f32.mrf.mxu0
  %v746 = vadd.f32 %v616, %v745
  %v747 = vpop.f32.mrf.mxu0
  %v748 = vadd.f32 %v621, %v747
  %749 = vmatmul.bf16.gmra.mxu0 %v717
  %v750 = vpop.f32.mrf.mxu0
  %v751 = vadd.f32 %v626, %v750
  %v752 = vpop.f32.mrf.mxu0
  %v753 = vadd.f32 %v631, %v752
  %754 = vmatmul.bf16.gmra.mxu0 %v718
  %v755 = vpop.f32.mrf.mxu0
  %v756 = vadd.f32 %v636, %v755
  %v757 = vpop.f32.mrf.mxu0
  %v758 = vadd.f32 %v641, %v757
  %759 = vmatmul.bf16.gmra.mxu0 %v719
  %v760 = vpop.f32.mrf.mxu0
  %v761 = vadd.f32 %v646, %v760
  %v762 = vpop.f32.mrf.mxu0
  %v763 = vadd.f32 %v651, %v762
  %764 = vmatmul.bf16.gmra.mxu0 %v720
  %v765 = vpop.f32.mrf.mxu0
  %v766 = vadd.f32 %v656, %v765
  %v767 = vpop.f32.mrf.mxu0
  %v768 = vadd.f32 %v661, %v767
  %769 = vmatmul.bf16.gmra.mxu0 %v721
  %v770 = vpop.f32.mrf.mxu0
  %v771 = vadd.f32 %v666, %v770
  %v772 = vpop.f32.mrf.mxu0
  %v773 = vadd.f32 %v671, %v772
  %774 = vmatmul.bf16.gmra.mxu0 %v722
  %v775 = vpop.f32.mrf.mxu0
  %v776 = vadd.f32 %v676, %v775
  %v777 = vpop.f32.mrf.mxu0
  %v778 = vadd.f32 %v681, %v777
  %779 = vdwg.mxu0
  %v780 = vxor.u32 %v741, 2147483648
  %v781 = vxor.u32 %v743, 2147483648
  %v782 = vxor.u32 %v746, 2147483648
  %v783 = vxor.u32 %v748, 2147483648
  %v784 = vxor.u32 %v751, 2147483648
  %v785 = vxor.u32 %v753, 2147483648
  %v786 = vxor.u32 %v756, 2147483648
  %v787 = vxor.u32 %v758, 2147483648
  %v788 = vxor.u32 %v761, 2147483648
  %v789 = vxor.u32 %v763, 2147483648
  %v790 = vxor.u32 %v766, 2147483648
  %v791 = vxor.u32 %v768, 2147483648
  %v792 = vxor.u32 %v771, 2147483648
  %v793 = vxor.u32 %v773, 2147483648
  %v794 = vxor.u32 %v776, 2147483648
  %v795 = vxor.u32 %v778, 2147483648
  %v796 = vmul.f32 %v780, 1.442695
  %v797 = vpow.pop %v796
  %v798 = vmul.f32 %v781, 1.442695
  %v799 = vpow.pop %v798
  %v800 = vmul.f32 %v782, 1.442695
  %v801 = vpow.pop %v800
  %v802 = vmul.f32 %v783, 1.442695
  %v803 = vpow.pop %v802
  %v804 = vmul.f32 %v784, 1.442695
  %v805 = vpow.pop %v804
  %v806 = vmul.f32 %v785, 1.442695
  %v807 = vpow.pop %v806
  %v808 = vmul.f32 %v786, 1.442695
  %v809 = vpow.pop %v808
  %v810 = vmul.f32 %v787, 1.442695
  %v811 = vpow.pop %v810
  %v812 = vmul.f32 %v788, 1.442695
  %v813 = vpow.pop %v812
  %v814 = vmul.f32 %v789, 1.442695
  %v815 = vpow.pop %v814
  %v816 = vmul.f32 %v790, 1.442695
  %v817 = vpow.pop %v816
  %v818 = vmul.f32 %v791, 1.442695
  %v819 = vpow.pop %v818
  %v820 = vmul.f32 %v792, 1.442695
  %v821 = vpow.pop %v820
  %v822 = vmul.f32 %v793, 1.442695
  %v823 = vpow.pop %v822
  %v824 = vmul.f32 %v794, 1.442695
  %v825 = vpow.pop %v824
  %v826 = vmul.f32 %v795, 1.442695
  %v827 = vpow.pop %v826
  %v828 = vadd.f32 %v797, 1.0
  %v829 = vadd.f32 %v799, 1.0
  %v830 = vadd.f32 %v801, 1.0
  %v831 = vadd.f32 %v803, 1.0
  %v832 = vadd.f32 %v805, 1.0
  %v833 = vadd.f32 %v807, 1.0
  %v834 = vadd.f32 %v809, 1.0
  %v835 = vadd.f32 %v811, 1.0
  %v836 = vadd.f32 %v813, 1.0
  %v837 = vadd.f32 %v815, 1.0
  %v838 = vadd.f32 %v817, 1.0
  %v839 = vadd.f32 %v819, 1.0
  %v840 = vadd.f32 %v821, 1.0
  %v841 = vadd.f32 %v823, 1.0
  %v842 = vadd.f32 %v825, 1.0
  %v843 = vadd.f32 %v827, 1.0
  %v844 = vrcp.pop %v828
  %v845 = vmul.f32 %v828, %v844
  %v846 = vsub.f32 1.0, %v845
  %v847 = vmul.f32 %v844, %v846
  %v848 = vadd.f32 %v844, %v847
  %vm849 = vweird.f32 %v828
  %vm850 = vweird.f32 %v844
  %vm851 = vmor %vm849, %vm850
  %v852 = vsel %vm851, %v844, %v848
  %v853 = vand.u32 2147483647, %v828
  %vm854 = vcmp.eq.f32.partialorder %v853, 8.507059e+37
  %v855 = vand.u32 %v828, 2147483648
  %v856 = vor.u32 1.1754944e-38, %v855
  %v857 = vsel %vm854, %v856, %v852
  %v858 = vmul.f32 1.0, %v857
  %v859 = vrcp.pop %v829
  %v860 = vmul.f32 %v829, %v859
  %v861 = vsub.f32 1.0, %v860
  %v862 = vmul.f32 %v859, %v861
  %v863 = vadd.f32 %v859, %v862
  %vm864 = vweird.f32 %v829
  %vm865 = vweird.f32 %v859
  %vm866 = vmor %vm864, %vm865
  %v867 = vsel %vm866, %v859, %v863
  %v868 = vand.u32 2147483647, %v829
  %vm869 = vcmp.eq.f32.partialorder %v868, 8.507059e+37
  %v870 = vand.u32 %v829, 2147483648
  %v871 = vor.u32 1.1754944e-38, %v870
  %v872 = vsel %vm869, %v871, %v867
  %v873 = vmul.f32 1.0, %v872
  %v874 = vrcp.pop %v830
  %v875 = vmul.f32 %v830, %v874
  %v876 = vsub.f32 1.0, %v875
  %v877 = vmul.f32 %v874, %v876
  %v878 = vadd.f32 %v874, %v877
  %vm879 = vweird.f32 %v830
  %vm880 = vweird.f32 %v874
  %vm881 = vmor %vm879, %vm880
  %v882 = vsel %vm881, %v874, %v878
  %v883 = vand.u32 2147483647, %v830
  %vm884 = vcmp.eq.f32.partialorder %v883, 8.507059e+37
  %v885 = vand.u32 %v830, 2147483648
  %v886 = vor.u32 1.1754944e-38, %v885
  %v887 = vsel %vm884, %v886, %v882
  %v888 = vmul.f32 1.0, %v887
  %v889 = vrcp.pop %v831
  %v890 = vmul.f32 %v831, %v889
  %v891 = vsub.f32 1.0, %v890
  %v892 = vmul.f32 %v889, %v891
  %v893 = vadd.f32 %v889, %v892
  %vm894 = vweird.f32 %v831
  %vm895 = vweird.f32 %v889
  %vm896 = vmor %vm894, %vm895
  %v897 = vsel %vm896, %v889, %v893
  %v898 = vand.u32 2147483647, %v831
  %vm899 = vcmp.eq.f32.partialorder %v898, 8.507059e+37
  %v900 = vand.u32 %v831, 2147483648
  %v901 = vor.u32 1.1754944e-38, %v900
  %v902 = vsel %vm899, %v901, %v897
  %v903 = vmul.f32 1.0, %v902
  %v904 = vrcp.pop %v832
  %v905 = vmul.f32 %v832, %v904
  %v906 = vsub.f32 1.0, %v905
  %v907 = vmul.f32 %v904, %v906
  %v908 = vadd.f32 %v904, %v907
  %vm909 = vweird.f32 %v832
  %vm910 = vweird.f32 %v904
  %vm911 = vmor %vm909, %vm910
  %v912 = vsel %vm911, %v904, %v908
  %v913 = vand.u32 2147483647, %v832
  %vm914 = vcmp.eq.f32.partialorder %v913, 8.507059e+37
  %v915 = vand.u32 %v832, 2147483648
  %v916 = vor.u32 1.1754944e-38, %v915
  %v917 = vsel %vm914, %v916, %v912
  %v918 = vmul.f32 1.0, %v917
  %v919 = vrcp.pop %v833
  %v920 = vmul.f32 %v833, %v919
  %v921 = vsub.f32 1.0, %v920
  %v922 = vmul.f32 %v919, %v921
  %v923 = vadd.f32 %v919, %v922
  %vm924 = vweird.f32 %v833
  %vm925 = vweird.f32 %v919
  %vm926 = vmor %vm924, %vm925
  %v927 = vsel %vm926, %v919, %v923
  %v928 = vand.u32 2147483647, %v833
  %vm929 = vcmp.eq.f32.partialorder %v928, 8.507059e+37
  %v930 = vand.u32 %v833, 2147483648
  %v931 = vor.u32 1.1754944e-38, %v930
  %v932 = vsel %vm929, %v931, %v927
  %v933 = vmul.f32 1.0, %v932
  %v934 = vrcp.pop %v834
  %v935 = vmul.f32 %v834, %v934
  %v936 = vsub.f32 1.0, %v935
  %v937 = vmul.f32 %v934, %v936
  %v938 = vadd.f32 %v934, %v937
  %vm939 = vweird.f32 %v834
  %vm940 = vweird.f32 %v934
  %vm941 = vmor %vm939, %vm940
  %v942 = vsel %vm941, %v934, %v938
  %v943 = vand.u32 2147483647, %v834
  %vm944 = vcmp.eq.f32.partialorder %v943, 8.507059e+37
  %v945 = vand.u32 %v834, 2147483648
  %v946 = vor.u32 1.1754944e-38, %v945
  %v947 = vsel %vm944, %v946, %v942
  %v948 = vmul.f32 1.0, %v947
  %v949 = vrcp.pop %v835
  %v950 = vmul.f32 %v835, %v949
  %v951 = vsub.f32 1.0, %v950
  %v952 = vmul.f32 %v949, %v951
  %v953 = vadd.f32 %v949, %v952
  %vm954 = vweird.f32 %v835
  %vm955 = vweird.f32 %v949
  %vm956 = vmor %vm954, %vm955
  %v957 = vsel %vm956, %v949, %v953
  %v958 = vand.u32 2147483647, %v835
  %vm959 = vcmp.eq.f32.partialorder %v958, 8.507059e+37
  %v960 = vand.u32 %v835, 2147483648
  %v961 = vor.u32 1.1754944e-38, %v960
  %v962 = vsel %vm959, %v961, %v957
  %v963 = vmul.f32 1.0, %v962
  %v964 = vrcp.pop %v836
  %v965 = vmul.f32 %v836, %v964
  %v966 = vsub.f32 1.0, %v965
  %v967 = vmul.f32 %v964, %v966
  %v968 = vadd.f32 %v964, %v967
  %vm969 = vweird.f32 %v836
  %vm970 = vweird.f32 %v964
  %vm971 = vmor %vm969, %vm970
  %v972 = vsel %vm971, %v964, %v968
  %v973 = vand.u32 2147483647, %v836
  %vm974 = vcmp.eq.f32.partialorder %v973, 8.507059e+37
  %v975 = vand.u32 %v836, 2147483648
  %v976 = vor.u32 1.1754944e-38, %v975
  %v977 = vsel %vm974, %v976, %v972
  %v978 = vmul.f32 1.0, %v977
  %v979 = vrcp.pop %v837
  %v980 = vmul.f32 %v837, %v979
  %v981 = vsub.f32 1.0, %v980
  %v982 = vmul.f32 %v979, %v981
  %v983 = vadd.f32 %v979, %v982
  %vm984 = vweird.f32 %v837
  %vm985 = vweird.f32 %v979
  %vm986 = vmor %vm984, %vm985
  %v987 = vsel %vm986, %v979, %v983
  %v988 = vand.u32 2147483647, %v837
  %vm989 = vcmp.eq.f32.partialorder %v988, 8.507059e+37
  %v990 = vand.u32 %v837, 2147483648
  %v991 = vor.u32 1.1754944e-38, %v990
  %v992 = vsel %vm989, %v991, %v987
  %v993 = vmul.f32 1.0, %v992
  %v994 = vrcp.pop %v838
  %v995 = vmul.f32 %v838, %v994
  %v996 = vsub.f32 1.0, %v995
  %v997 = vmul.f32 %v994, %v996
  %v998 = vadd.f32 %v994, %v997
  %vm999 = vweird.f32 %v838
  %vm1000 = vweird.f32 %v994
  %vm1001 = vmor %vm999, %vm1000
  %v1002 = vsel %vm1001, %v994, %v998
  %v1003 = vand.u32 2147483647, %v838
  %vm1004 = vcmp.eq.f32.partialorder %v1003, 8.507059e+37
  %v1005 = vand.u32 %v838, 2147483648
  %v1006 = vor.u32 1.1754944e-38, %v1005
  %v1007 = vsel %vm1004, %v1006, %v1002
  %v1008 = vmul.f32 1.0, %v1007
  %v1009 = vrcp.pop %v839
  %v1010 = vmul.f32 %v839, %v1009
  %v1011 = vsub.f32 1.0, %v1010
  %v1012 = vmul.f32 %v1009, %v1011
  %v1013 = vadd.f32 %v1009, %v1012
  %vm1014 = vweird.f32 %v839
  %vm1015 = vweird.f32 %v1009
  %vm1016 = vmor %vm1014, %vm1015
  %v1017 = vsel %vm1016, %v1009, %v1013
  %v1018 = vand.u32 2147483647, %v839
  %vm1019 = vcmp.eq.f32.partialorder %v1018, 8.507059e+37
  %v1020 = vand.u32 %v839, 2147483648
  %v1021 = vor.u32 1.1754944e-38, %v1020
  %v1022 = vsel %vm1019, %v1021, %v1017
  %v1023 = vmul.f32 1.0, %v1022
  %v1024 = vrcp.pop %v840
  %v1025 = vmul.f32 %v840, %v1024
  %v1026 = vsub.f32 1.0, %v1025
  %v1027 = vmul.f32 %v1024, %v1026
  %v1028 = vadd.f32 %v1024, %v1027
  %vm1029 = vweird.f32 %v840
  %vm1030 = vweird.f32 %v1024
  %vm1031 = vmor %vm1029, %vm1030
  %v1032 = vsel %vm1031, %v1024, %v1028
  %v1033 = vand.u32 2147483647, %v840
  %vm1034 = vcmp.eq.f32.partialorder %v1033, 8.507059e+37
  %v1035 = vand.u32 %v840, 2147483648
  %v1036 = vor.u32 1.1754944e-38, %v1035
  %v1037 = vsel %vm1034, %v1036, %v1032
  %v1038 = vmul.f32 1.0, %v1037
  %v1039 = vrcp.pop %v841
  %v1040 = vmul.f32 %v841, %v1039
  %v1041 = vsub.f32 1.0, %v1040
  %v1042 = vmul.f32 %v1039, %v1041
  %v1043 = vadd.f32 %v1039, %v1042
  %vm1044 = vweird.f32 %v841
  %vm1045 = vweird.f32 %v1039
  %vm1046 = vmor %vm1044, %vm1045
  %v1047 = vsel %vm1046, %v1039, %v1043
  %v1048 = vand.u32 2147483647, %v841
  %vm1049 = vcmp.eq.f32.partialorder %v1048, 8.507059e+37
  %v1050 = vand.u32 %v841, 2147483648
  %v1051 = vor.u32 1.1754944e-38, %v1050
  %v1052 = vsel %vm1049, %v1051, %v1047
  %v1053 = vmul.f32 1.0, %v1052
  %v1054 = vrcp.pop %v842
  %v1055 = vmul.f32 %v842, %v1054
  %v1056 = vsub.f32 1.0, %v1055
  %v1057 = vmul.f32 %v1054, %v1056
  %v1058 = vadd.f32 %v1054, %v1057
  %vm1059 = vweird.f32 %v842
  %vm1060 = vweird.f32 %v1054
  %vm1061 = vmor %vm1059, %vm1060
  %v1062 = vsel %vm1061, %v1054, %v1058
  %v1063 = vand.u32 2147483647, %v842
  %vm1064 = vcmp.eq.f32.partialorder %v1063, 8.507059e+37
  %v1065 = vand.u32 %v842, 2147483648
  %v1066 = vor.u32 1.1754944e-38, %v1065
  %v1067 = vsel %vm1064, %v1066, %v1062
  %v1068 = vmul.f32 1.0, %v1067
  %v1069 = vrcp.pop %v843
  %v1070 = vmul.f32 %v843, %v1069
  %v1071 = vsub.f32 1.0, %v1070
  %v1072 = vmul.f32 %v1069, %v1071
  %v1073 = vadd.f32 %v1069, %v1072
  %vm1074 = vweird.f32 %v843
  %vm1075 = vweird.f32 %v1069
  %vm1076 = vmor %vm1074, %vm1075
  %v1077 = vsel %vm1076, %v1069, %v1073
  %v1078 = vand.u32 2147483647, %v843
  %vm1079 = vcmp.eq.f32.partialorder %v1078, 8.507059e+37
  %v1080 = vand.u32 %v843, 2147483648
  %v1081 = vor.u32 1.1754944e-38, %v1080
  %v1082 = vsel %vm1079, %v1081, %v1077
  %v1083 = vmul.f32 1.0, %v1082
  %v1084 = vld [vmem:[%s5] sm:$0xf]
  %v1085 = vpack.c.bf16 %v873, %v858
  %v1086 = vpack.c.bf16 %v903, %v888
  %v1087 = vpack.c.bf16 %v933, %v918
  %v1088 = vpack.c.bf16 %v963, %v948
  %v1089 = vpack.c.bf16 %v993, %v978
  %v1090 = vpack.c.bf16 %v1023, %v1008
  %v1091 = vpack.c.bf16 %v1053, %v1038
  %v1092 = vpack.c.bf16 %v1083, %v1068
  %v1093 = vld [vmem:[%s6] sm:$0xff]
  %1095 = vset.pattern.permute.xlu0 0
  %1096 = vperm.xlu0 %1095, %v1093
  %v1097 = vpop.permute.xlu0 %1096
  %1099 = vmatpush.bf16.msra.mxu0 %v1092
  %1100 = vmatpush.bf16.msra.mxu0 %v1091
  %1101 = vmatpush.bf16.msra.mxu0 %v1090
  %1102 = vmatpush.bf16.msra.mxu0 %v1089
  %1103 = vmatpush.bf16.msra.mxu0 %v1088
  %1104 = vmatpush.bf16.msra.mxu0 %v1087
  %1105 = vmatpush.bf16.msra.mxu0 %v1086
  %1106 = vmatpush.bf16.msra.mxu0 %v1085
  %1107 = vmatmul.bf16.gmra.mxu0 %v1084
  %v1108 = vpop.f32.mrf.mxu0
  %v1109 = vadd.f32 %v1097, %v1108
  %v1110 = vpop.f32.mrf.mxu0
  %1111 = vdwg.mxu0
  %1112 = vst [vmem:[%s7] sm:$0xff] %v1109
  // Predicated region
  $region30: #{_policy_forward_prepared.1} parent=0 // pred_check
    _
  $region31: #{_policy_forward_prepared.1} parent=0 // pred_check_branch
    %1114 = sbr.rel (0) target = $region33
  $region32: #{_policy_forward_prepared.1} parent=0 // pred_region
    _
  $region33: #{_policy_forward_prepared.1} parent=0 // pred_fallthru
    _
  // Predicated region
  $region34: #{_policy_forward_prepared.1} parent=0 // pred_check
    _
  $region35: #{_policy_forward_prepared.1} parent=0 // pred_check_branch
    %1116 = sbr.rel (0) target = $region37
  $region36: #{_policy_forward_prepared.1} parent=0 // pred_region
    _
  $region37: #{_policy_forward_prepared.1} parent=0 // pred_fallthru
    _

</llo_original>
